<compile_context>
chip_gen: v7x
topology: tpu7x:2x2x1
jax: 0.10.0
libtpu: 0.0.40
codegen_flags: <defaults>
</compile_context>

<pallas_src>
import jax
import jax.numpy as jnp
from jax.experimental import pallas as pl
from jax.experimental.pallas import tpu as pltpu


def _pm_embed_kernel(x_ref, wt_ref, o_ref):
    # x_ref : (tile_n, 1)           int32 -- token ids for this tile (streamed)
    # wt_ref: (vocab_pad, d_model)  f32   -- zero-padded transposed table (resident)
    # o_ref : (tile_n, d_model)     f32   -- lane-dense output tile
    ids = x_ref[...]                                               # (tile_n, 1)
    tile_n = o_ref.shape[0]
    vocab_pad = wt_ref.shape[0]
    # One-hot rows over the (128-aligned) vocab axis; exact 0/1 values, so the
    # f32 MXU matmul reproduces the gather bit-exactly.
    vocab_iota = jax.lax.broadcasted_iota(jnp.int32, (tile_n, vocab_pad), 1)
    onehot = (vocab_iota == ids).astype(wt_ref.dtype)              # (tile_n, vocab_pad)
    o_ref[...] = jnp.dot(onehot, wt_ref[...],
                         preferred_element_type=jnp.float32)       # (tile_n, d_model)


def pm_embed(x, w_e, *, tile_n=1024):
    """Pallas equivalent of PMEmbed.forward.

    x   : (batch, seq) integer indices in [0, d_vocab)
    w_e : (d_model, d_vocab) float32
    returns (batch, seq, d_model) float32 == einsum('dbp -> bpd', W_E[:, x])
    """
    b, s = x.shape
    d_model, d_vocab = w_e.shape
    n = b * s

    # ---- wrapper-side layout plumbing (cheap XLA work, keeps the kernel clean) ----
    # Transpose and zero-pad the vocab axis to a multiple of 128 lanes so the
    # one-hot fills whole vregs and the MXU contraction dim is aligned. Padded
    # rows are zero, so results are unchanged.
    vocab_pad = ((d_vocab + 127) // 128) * 128
    w_e_t = jnp.pad(jnp.transpose(w_e).astype(jnp.float32),
                    ((0, vocab_pad - d_vocab), (0, 0)))            # (vocab_pad, d_model)

    # Flatten tokens; clamp the tile to the (8-aligned) problem size and pad N
    # so the grid tiles evenly. Padded ids are 0 and their rows are sliced off
    # after the call.
    # TODO(synk): out-of-range token ids silently yield a zero embedding row,
    # whereas PyTorch W_E[:, x] would raise an indexing error.
    tile_n = max(8, min(tile_n, ((n + 7) // 8) * 8))
    n_pad = pl.cdiv(n, tile_n) * tile_n
    ids = jnp.pad(x.reshape(-1).astype(jnp.int32), (0, n_pad - n)).reshape(n_pad, 1)

    cost = pl.CostEstimate(
        flops=2 * n_pad * vocab_pad * d_model,
        transcendentals=0,
        bytes_accessed=(n_pad * 4                    # ids
                        + vocab_pad * d_model * 4    # table (fetched once)
                        + n_pad * d_model * 4),      # output
    )

    out_pad = pl.pallas_call(
        _pm_embed_kernel,
        out_shape=jax.ShapeDtypeStruct((n_pad, d_model), jnp.float32),
        grid_spec=pltpu.PrefetchScalarGridSpec(
            num_scalar_prefetch=0,
            grid=(n_pad // tile_n,),
            in_specs=[
                pl.BlockSpec((tile_n, 1), lambda i: (i, 0)),           # streamed ids
                pl.BlockSpec((vocab_pad, d_model), lambda i: (0, 0)),  # resident table
            ],
            out_specs=pl.BlockSpec((tile_n, d_model), lambda i: (i, 0)),
        ),
        compiler_params=pltpu.CompilerParams(
            dimension_semantics=("parallel",),       # megacore shard on v7x; no-op on v5e/v6e
            vmem_limit_bytes=32 * 1024 * 1024,       # fits v7x scoped default with headroom
        ),
        cost_estimate=cost,
    )(ids, w_e_t)

    return out_pad[:n].reshape(b, s, d_model)


if __name__ == "__main__":
    # Shapes consistent with the module: d_model=128, d_vocab=p+1=114.
    d_model = 128
    p = 113
    d_vocab = p + 1
    batch = 2
    seq = 8

    key = jax.random.PRNGKey(0)
    k_w, k_x = jax.random.split(key)

    # Deterministic parameter init mirroring torch.randn(...) / sqrt(d_model)
    w_e = (jax.random.normal(k_w, (d_model, d_vocab), dtype=jnp.float32)
           / jnp.sqrt(jnp.float32(d_model)))
    x = jax.random.randint(k_x, (batch, seq), 0, d_vocab, dtype=jnp.int32)

    out = pm_embed(x, w_e)
    out = jax.block_until_ready(out)

    # Reference: out[b, p, d] = W_E[d, x[b, p]]  <=>  W_E.T[x]
    ref = jnp.transpose(w_e)[x]
    assert out.shape == (batch, seq, d_model)
    assert jnp.allclose(out, ref, atol=1e-5, rtol=1e-5)

    print("KERNEL_OK")
</pallas_src>

<mosaic_0001>
module attributes {stable_mosaic.version = 11 : i64} {
  func.func @_pm_embed_kernel(%arg0: i32, %arg1: memref<16x1xi32, #tpu.memory_space<vmem>>, %arg2: memref<128x128xf32, #tpu.memory_space<vmem>>, %arg3: memref<16x128xf32, #tpu.memory_space<vmem>>) attributes {dimension_semantics = [#tpu.dimension_semantics<parallel>], iteration_bounds = array<i64: 1>, scalar_prefetch = 0 : i64, scratch_operands = 0 : i64, tpu.core_type = #tpu.core_type<tc>, window_params = [{transform_indices = @transform_0, window_bounds = array<i64: 16, 1>}, {pipeline_mode = #tpu.pipeline_mode<synchronous>, transform_indices = @transform_1, window_bounds = array<i64: 128, 128>}, {transform_indices = @transform_2, window_bounds = array<i64: 16, 128>}]} {
    %c0 = arith.constant 0 : index
    %c0_0 = arith.constant 0 : index
    %0 = vector.load %arg1[%c0, %c0_0] : memref<16x1xi32, #tpu.memory_space<vmem>>, vector<16x1xi32>
    %1 = tpu.iota {dimensions = array<i32: 1>} : vector<16x128xi32>
    %2 = vector.broadcast %0 : vector<16x1xi32> to vector<16x128xi32>
    %3 = arith.cmpi eq, %1, %2 : vector<16x128xi32>
    %4 = arith.extui %3 : vector<16x128xi1> to vector<16x128xi32>
    %5 = arith.sitofp %4 : vector<16x128xi32> to vector<16x128xf32>
    %c0_1 = arith.constant 0 : index
    %c0_2 = arith.constant 0 : index
    %6 = vector.load %arg2[%c0_1, %c0_2] : memref<128x128xf32, #tpu.memory_space<vmem>>, vector<128x128xf32>
    %cst = arith.constant dense<0.000000e+00> : vector<16x128xf32>
    %7 = tpu.matmul %5, %6, %cst {dimension_numbers = #tpu.dot_dimension_numbers<[1], [0], [0], [1], [0, 0, 1, 1], [], []>} : vector<16x128xf32>, vector<128x128xf32>, vector<16x128xf32> -> vector<16x128xf32>
    %c0_3 = arith.constant 0 : index
    %c0_4 = arith.constant 0 : index
    %8 = vector.load %arg3[%c0_3, %c0_4] : memref<16x128xf32, #tpu.memory_space<vmem>>, vector<16x128xf32>
    tpu.vector_store %arg3[%c0_3, %c0_4], %7 {strides = array<i32>} : memref<16x128xf32, #tpu.memory_space<vmem>>, vector<16x128xf32>,
    return
  }
  func.func @transform_0(%arg0: i32) -> (i32, i32) {
    %c0_i32 = arith.constant 0 : i32
    %c0_i32_0 = arith.constant 0 : i32
    return %arg0, %c0_i32 : i32, i32
  }
  func.func @transform_1(%arg0: i32) -> (i32, i32) {
    %c0_i32 = arith.constant 0 : i32
    %c0_i32_0 = arith.constant 0 : i32
    %c0_i32_1 = arith.constant 0 : i32
    return %c0_i32, %c0_i32_0 : i32, i32
  }
  func.func @transform_2(%arg0: i32) -> (i32, i32) {
    %c0_i32 = arith.constant 0 : i32
    %c0_i32_0 = arith.constant 0 : i32
    return %arg0, %c0_i32 : i32, i32
  }
}

</mosaic_0001>

<llo_original>
// kernel: tpu_custom_call.1
$region0: #{tpu_custom_call.1}
  #allocation0 [shape = 'u32[]', space=smem, size = 0x4, offset = 0x4, fixed_abs, tag = 'smem constant byte address 0x4 - core index']
  #allocation1 [shape = 'u32[144,128]{1,0:T(1,128)}', space=vmem, size = 0x12000, scoped, tag = 'internal scratch']
  %s0 = inlined_call_operand.vmem [shape: s32[16,1], index: 0, kind: input, shape index: {}]
  %s1 = inlined_call_operand.hbm [shape: f32[128,128], index: 1, kind: input, shape index: {}]
  %s2 = inlined_call_operand.hbm [shape: f32[16,128], index: 2, kind: output, shape index: {}]
  %s3 = sld [smem:[#allocation0]]
  $region22: #{tpu_custom_call.1} parent=0
    _
  %s5 = ssub.s32 1, %s3
  %s6 = scalar_select 0, %s5, %s3
  $region1: #{tpu_custom_call.1} parent=0
    #allocation2 [shape = 'u8[65536]{0}', space=vmem, size = 0x10000, scoped, tag = 'input window, operand 1, single buffered']
    #allocation3 [shape = 's32[1]{0}', space=sflag, size = 0x4, scoped, tag = 'scoped memory for tpu_custom_call.1']
    #allocation4 [shape = 's32[1]{0}', space=sflag, size = 0x4, scoped, tag = 'scoped memory for tpu_custom_call.1']
    #allocation5 [shape = 'u8[8192]{0}', space=vmem, size = 0x2000, scoped, tag = 'output window, operand 0, single buffered']
    %7 = vsyncpa [#allocation3], 0
    %8 = vsyncpa [#allocation4], 0
    // Predicated region
    $region2: #{tpu_custom_call.1} parent=1 // pred_check
      _
    $region3: #{tpu_custom_call.1} parent=1 // pred_check_branch
      %10 = sbr.rel (0) target = $region5
    $region4: #{tpu_custom_call.1} parent=1 // pred_region
      _
    $region5: #{tpu_custom_call.1} parent=1 // pred_fallthru
      _
    // Predicated region
    $region6: #{tpu_custom_call.1} parent=1 // pred_check
      _
    $region7: #{tpu_custom_call.1} parent=1 // pred_check_branch
      %12 = sbr.rel (0) target = $region9
    $region8: #{tpu_custom_call.1} parent=1 // pred_region
      %s14 = ssub.s32 2048, 2048
      %15 = vsyncadd [#allocation3], %s14
      %s16 = sshll.u32 [#allocation2], 4
      %s17 = int_to_ptr.vmem [resolvable:$true] %s16
      %22 = dma.hbm_to_vmem [thread:$0]  %s1, 2048, %s17, [#allocation3], 128, 128, 8
    $region9: #{tpu_custom_call.1} parent=1 // pred_fallthru
      _
    // Predicated region
    $region10: #{tpu_custom_call.1} parent=1 // pred_check
      _
    $region11: #{tpu_custom_call.1} parent=1 // pred_check_branch
      %24 = sbr.rel (0) target = $region13
    $region12: #{tpu_custom_call.1} parent=1 // pred_region
      %25 = dma.done [#allocation3], 2048
    $region13: #{tpu_custom_call.1} parent=1 // pred_fallthru
      _
    %v26 = vld [vmem:[%s0] sm:$0xff]
    %v27 = vld [vmem:[%s0 + $0x8] sm:$0xff]
    %v28 = vlaneseq
    %v29 = vand.u32 %v28, 127
    %30 = vset.pattern.permute.xlu0 0
    %31 = vperm.xlu0 %30, %v26
    %v32 = vpop.permute.xlu0 %31
    %33 = vset.pattern.permute.xlu0 0
    %34 = vperm.xlu0 %33, %v27
    %v35 = vpop.permute.xlu0 %34
    %vm36 = vcmp.eq.s32.totalorder %v29, %v32
    %vm37 = vcmp.eq.s32.totalorder %v29, %v35
    %v38 = vsel %vm36, 1, 0
    %v39 = vsel %vm37, 1, 0
    %v40 = vcvt.s32.f32 %v38
    %v41 = vcvt.s32.f32 %v39
    %v42 = vld [vmem:[#allocation2] sm:$0xff]
    %v43 = vld [vmem:[#allocation2 + $0x8] sm:$0xff]
    %v44 = vld [vmem:[#allocation2 + $0x10] sm:$0xff]
    %v45 = vld [vmem:[#allocation2 + $0x18] sm:$0xff]
    %v46 = vld [vmem:[#allocation2 + $0x20] sm:$0xff]
    %v47 = vld [vmem:[#allocation2 + $0x28] sm:$0xff]
    %v48 = vld [vmem:[#allocation2 + $0x30] sm:$0xff]
    %v49 = vld [vmem:[#allocation2 + $0x38] sm:$0xff]
    %v50 = vld [vmem:[#allocation2 + $0x40] sm:$0xff]
    %v51 = vld [vmem:[#allocation2 + $0x48] sm:$0xff]
    %v52 = vld [vmem:[#allocation2 + $0x50] sm:$0xff]
    %v53 = vld [vmem:[#allocation2 + $0x58] sm:$0xff]
    %v54 = vld [vmem:[#allocation2 + $0x60] sm:$0xff]
    %v55 = vld [vmem:[#allocation2 + $0x68] sm:$0xff]
    %v56 = vld [vmem:[#allocation2 + $0x70] sm:$0xff]
    %v57 = vld [vmem:[#allocation2 + $0x78] sm:$0xff]
    %58 = vmatprep.subr.mxu0 0.0
    %59 = vmatpush1.msra.mxu0 %v42
    %60 = vmatprep.subr.mxu0 0.0
    %61 = vmatpush1.msra.mxu0 %v43
    %62 = vmatprep.subr.mxu0 0.0
    %63 = vmatpush1.msra.mxu0 %v44
    %64 = vmatprep.subr.mxu0 0.0
    %65 = vmatpush1.msra.mxu0 %v45
    %66 = vmatprep.subr.mxu0 0.0
    %67 = vmatpush1.msra.mxu0 %v46
    %68 = vmatprep.subr.mxu0 0.0
    %69 = vmatpush1.msra.mxu0 %v47
    %70 = vmatprep.subr.mxu0 0.0
    %71 = vmatpush1.msra.mxu0 %v48
    %72 = vmatprep.subr.mxu0 0.0
    %73 = vmatpush1.msra.mxu0 %v49
    %74 = vmatprep.subr.mxu0 0.0
    %75 = vmatpush1.msra.mxu0 %v50
    %76 = vmatprep.subr.mxu0 0.0
    %77 = vmatpush1.msra.mxu0 %v51
    %78 = vmatprep.subr.mxu0 0.0
    %79 = vmatpush1.msra.mxu0 %v52
    %80 = vmatprep.subr.mxu0 0.0
    %81 = vmatpush1.msra.mxu0 %v53
    %82 = vmatprep.subr.mxu0 0.0
    %83 = vmatpush1.msra.mxu0 %v54
    %84 = vmatprep.subr.mxu0 0.0
    %85 = vmatpush1.msra.mxu0 %v55
    %86 = vmatprep.subr.mxu0 0.0
    %87 = vmatpush1.msra.mxu0 %v56
    %88 = vmatprep.subr.mxu0 0.0
    %89 = vmatpush1.msra.mxu0 %v57
    %90 = vmatprep.subr.mxu0 0.0
    %91 = vmatpush1.msra.mxu0 0.0
    %92 = vmatprep.subr.mxu0 0.0
    %93 = vmatpush1.msra.mxu0 0.0
    %94 = vmatprep.subr.mxu0 0.0
    %95 = vmatpush1.msra.mxu0 0.0
    %96 = vmatprep.subr.mxu0 0.0
    %97 = vmatpush1.msra.mxu0 0.0
    %98 = vmatprep.subr.mxu0 0.0
    %99 = vmatpush1.msra.mxu0 0.0
    %100 = vmatprep.subr.mxu0 0.0
    %101 = vmatpush1.msra.mxu0 0.0
    %102 = vmatprep.subr.mxu0 0.0
    %103 = vmatpush1.msra.mxu0 0.0
    %104 = vmatprep.subr.mxu0 0.0
    %105 = vmatpush1.msra.mxu0 0.0
    %106 = vmatprep.subr.mxu0 0.0
    %107 = vmatpush1.msra.mxu0 0.0
    %108 = vmatprep.subr.mxu0 0.0
    %109 = vmatpush1.msra.mxu0 0.0
    %110 = vmatprep.subr.mxu0 0.0
    %111 = vmatpush1.msra.mxu0 0.0
    %112 = vmatprep.subr.mxu0 0.0
    %113 = vmatpush1.msra.mxu0 0.0
    %114 = vmatprep.subr.mxu0 0.0
    %115 = vmatpush1.msra.mxu0 0.0
    %116 = vmatprep.subr.mxu0 0.0
    %117 = vmatpush1.msra.mxu0 0.0
    %118 = vmatprep.subr.mxu0 0.0
    %119 = vmatpush1.msra.mxu0 0.0
    %120 = vmatprep.subr.mxu0 0.0
    %121 = vmatpush1.msra.mxu0 0.0
    %122 = vmatprep.mubr.f32.mxu0 0.0
    %123 = vmatmul.mubr.f32.gmra.mrb[0].mxu0 %v40
    %v124 = vpop.f32.mrb[0].mxu0
    %v125 = vadd.f32 0.0, %v124
    %v126 = vpop.f32.mrb[0].mxu0
    %127 = vmatprep.mubr.f32.mxu0 0.0
    %128 = vmatmul.mubr.f32.gmra.mrb[0].mxu0 %v41
    %v129 = vpop.f32.mrb[0].mxu0
    %v130 = vadd.f32 0.0, %v129
    %v131 = vpop.f32.mrb[0].mxu0
    %132 = vdwg.mxu0
    %133 = vst [vmem:[#allocation5] sm:$0xff] %v125
    %134 = vst [vmem:[#allocation5 + $0x8] sm:$0xff] %v130
    // Predicated region
    $region14: #{tpu_custom_call.1} parent=1 // pred_check
      _
    $region15: #{tpu_custom_call.1} parent=1 // pred_check_branch
      %136 = sbr.rel (0) target = $region17
    $region16: #{tpu_custom_call.1} parent=1 // pred_region
      %s138 = ssub.s32 256, 256
      %139 = vsyncadd [#allocation4], %s138
      %s140 = sshll.u32 [#allocation5], 4
      %s141 = int_to_ptr.vmem [resolvable:$true] %s140
      %146 = dma.vmem_to_hbm [thread:$0]  %s141, 256, %s2, [#allocation4], 128, 128, 8
    $region17: #{tpu_custom_call.1} parent=1 // pred_fallthru
      _
    // Predicated region
    $region18: #{tpu_custom_call.1} parent=1 // pred_check
      _
    $region19: #{tpu_custom_call.1} parent=1 // pred_check_branch
      %148 = sbr.rel (0) target = $region21
    $region20: #{tpu_custom_call.1} parent=1 // pred_region
      %149 = dma.done [#allocation4], 256
    $region21: #{tpu_custom_call.1} parent=1 // pred_fallthru
      _
    %150 = vsyncpa [#allocation3], 1
    %151 = vsyncpa [#allocation4], 1

</llo_original>
